<compile_context>
chip_gen: v6e
topology: v6e:2x2x1
jax: 0.10.0
libtpu: 0.0.40
codegen_flags: <defaults>
</compile_context>

<pallas_src>
import jax
import jax.numpy as jnp
from jax.experimental import pallas as pl
from jax.experimental.pallas import tpu as pltpu

EPS = 1e-10
LANE = 128
# Spatial tile, in 128-lane groups. 512 * 128 lanes * C=4 * 4 B = 1 MiB / block.
S_TILE_MAX = 512


def _l2norm_kernel(x_ref, w_ref, o_ref):
    # x_ref / o_ref: (1, C, S_TILE, 128) in VMEM.   w_ref: (C,) f32 in SMEM.
    x = x_ref[...].astype(jnp.float32)

    # Channel reduction: C is a leading (vreg-batch) dim, so this is C-1
    # elementwise VPU adds, not an XLU cross-sublane reduction.
    sq_sum = jnp.sum(x * x, axis=1)                       # (1, S_TILE, 128)
    inv = pl.reciprocal(jnp.sqrt(sq_sum) + EPS)           # 1 / (||x||_2 + eps)
    inv = inv[0]                                          # (S_TILE, 128)

    c_dim = x_ref.shape[1]
    for c in range(c_dim):                                # static unroll, C tiny
        o_ref[0, c] = (x[0, c] * inv * w_ref[c]).astype(o_ref.dtype)


def l2norm(x, weight):
    """x: (N, C, H, W), weight: (C,).  Returns (N, C, H, W)."""
    N, C, H, W = x.shape
    HW = H * W

    s_total = pl.cdiv(HW, LANE)                 # number of 128-lane groups
    s_tile = min(S_TILE_MAX, s_total)
    num_s = pl.cdiv(s_total, s_tile)
    s_pad = num_s * s_tile
    hw_pad = s_pad * LANE

    xf = x.reshape(N, C, HW)
    if hw_pad != HW:
        # Zero padding is safe: padded lanes see norm = eps -> out = 0, and are
        # sliced off below (no inf/nan).
        xf = jnp.pad(xf, ((0, 0), (0, 0), (0, hw_pad - HW)))
    x4 = xf.reshape(N, C, s_pad, LANE)

    w = weight.astype(jnp.float32)

    out = pl.pallas_call(
        _l2norm_kernel,
        out_shape=jax.ShapeDtypeStruct((N, C, s_pad, LANE), x.dtype),
        grid_spec=pltpu.PrefetchScalarGridSpec(
            num_scalar_prefetch=0,
            grid=(N, num_s),
            in_specs=[
                pl.BlockSpec((1, C, s_tile, LANE), lambda n, s: (n, 0, s, 0)),
                pl.BlockSpec(memory_space=pltpu.MemorySpace.SMEM),
            ],
            out_specs=pl.BlockSpec((1, C, s_tile, LANE), lambda n, s: (n, 0, s, 0)),
        ),
        compiler_params=pltpu.CompilerParams(
            dimension_semantics=("parallel", "parallel"),
        ),
    )(x4, w)

    return out.reshape(N, C, hw_pad)[:, :, :HW].reshape(N, C, H, W)


if __name__ == "__main__":
    # Module config: n_channels=4, scale=10.0 (init.constant_(weight, gamma)).
    n_channels = 4
    scale = 10.0

    key = jax.random.PRNGKey(0)
    x = jax.random.normal(key, (2, n_channels, 16, 16), dtype=jnp.float32)
    weight = jnp.full((n_channels,), scale, dtype=jnp.float32)

    out = l2norm(x, weight)
    out = jax.block_until_ready(out)

    # Reference check in plain JAX (same math as the PyTorch forward).
    norm = jnp.sqrt(jnp.sum(x * x, axis=1, keepdims=True)) + EPS
    ref = weight[None, :, None, None] * (x / norm)
    assert jnp.allclose(out, ref, atol=1e-5, rtol=1e-5), "mismatch vs reference"

    print("KERNEL_OK")
</pallas_src>

<mosaic_0001>
module attributes {stable_mosaic.version = 11 : i64} {
  func.func @_l2norm_kernel(%arg0: i32, %arg1: i32, %arg2: memref<1x4x2x128xf32, #tpu.memory_space<vmem>>, %arg3: memref<4xf32, #tpu.memory_space<smem>>, %arg4: memref<1x4x2x128xf32, #tpu.memory_space<vmem>>) attributes {dimension_semantics = [#tpu.dimension_semantics<parallel>, #tpu.dimension_semantics<parallel>], iteration_bounds = array<i64: 2, 1>, scalar_prefetch = 0 : i64, scratch_operands = 0 : i64, tpu.core_type = #tpu.core_type<tc>, window_params = [{transform_indices = @transform_0, window_bounds = array<i64: 1, 4, 2, 128>}, {transform_indices = @transform_1, window_bounds = array<i64: 4>}, {transform_indices = @transform_2, window_bounds = array<i64: 1, 4, 2, 128>}]} {
    %c0 = arith.constant 0 : index
    %c0_0 = arith.constant 0 : index
    %c0_1 = arith.constant 0 : index
    %c0_2 = arith.constant 0 : index
    %0 = vector.load %arg2[%c0, %c0_0, %c0_1, %c0_2] : memref<1x4x2x128xf32, #tpu.memory_space<vmem>>, vector<1x4x2x128xf32>
    %1 = arith.mulf %0, %0 : vector<1x4x2x128xf32>
    %cst = arith.constant dense<0.000000e+00> : vector<1x2x128xf32>
    %2 = vector.multi_reduction <add>, %1, %cst [1] : vector<1x4x2x128xf32> to vector<1x2x128xf32>
    %3 = math.sqrt %2 : vector<1x2x128xf32>
    %cst_3 = arith.constant 1.000000e-10 : f32
    %4 = vector.broadcast %cst_3 : f32 to vector<1x2x128xf32>
    %5 = arith.addf %3, %4 : vector<1x2x128xf32>
    %6 = tpu.reciprocal %5 : vector<1x2x128xf32> -> vector<1x2x128xf32>
    %7 = vector.shape_cast %6 : vector<1x2x128xf32> to vector<2x128xf32>
    %8 = vector.extract_strided_slice %0 {offsets = [0, 0, 0, 0], sizes = [1, 1, 2, 128], strides = [1, 1, 1, 1]} : vector<1x4x2x128xf32> to vector<1x1x2x128xf32>
    %9 = vector.shape_cast %8 : vector<1x1x2x128xf32> to vector<2x128xf32>
    %10 = arith.mulf %9, %7 : vector<2x128xf32>
    %c0_4 = arith.constant 0 : index
    %11 = memref.load %arg3[%c0_4] : memref<4xf32, #tpu.memory_space<smem>>
    %12 = vector.broadcast %11 : f32 to vector<2x128xf32>
    %13 = arith.mulf %10, %12 : vector<2x128xf32>
    %c0_5 = arith.constant 0 : index
    %c0_6 = arith.constant 0 : index
    %c0_7 = arith.constant 0 : index
    %c0_8 = arith.constant 0 : index
    %14 = vector.load %arg4[%c0_5, %c0_6, %c0_7, %c0_8] : memref<1x4x2x128xf32, #tpu.memory_space<vmem>>, vector<1x1x2x128xf32>
    %15 = vector.shape_cast %14 : vector<1x1x2x128xf32> to vector<2x128xf32>
    %16 = vector.shape_cast %13 : vector<2x128xf32> to vector<1x1x2x128xf32>
    tpu.vector_store %arg4[%c0_5, %c0_6, %c0_7, %c0_8], %16 {strides = array<i32>} : memref<1x4x2x128xf32, #tpu.memory_space<vmem>>, vector<1x1x2x128xf32>,
    %17 = vector.extract_strided_slice %0 {offsets = [0, 1, 0, 0], sizes = [1, 1, 2, 128], strides = [1, 1, 1, 1]} : vector<1x4x2x128xf32> to vector<1x1x2x128xf32>
    %18 = vector.shape_cast %17 : vector<1x1x2x128xf32> to vector<2x128xf32>
    %19 = arith.mulf %18, %7 : vector<2x128xf32>
    %c1 = arith.constant 1 : index
    %20 = memref.load %arg3[%c1] : memref<4xf32, #tpu.memory_space<smem>>
    %21 = vector.broadcast %20 : f32 to vector<2x128xf32>
    %22 = arith.mulf %19, %21 : vector<2x128xf32>
    %c0_9 = arith.constant 0 : index
    %c1_10 = arith.constant 1 : index
    %c0_11 = arith.constant 0 : index
    %c0_12 = arith.constant 0 : index
    %23 = vector.load %arg4[%c0_9, %c1_10, %c0_11, %c0_12] : memref<1x4x2x128xf32, #tpu.memory_space<vmem>>, vector<1x1x2x128xf32>
    %24 = vector.shape_cast %23 : vector<1x1x2x128xf32> to vector<2x128xf32>
    %25 = vector.shape_cast %22 : vector<2x128xf32> to vector<1x1x2x128xf32>
    tpu.vector_store %arg4[%c0_9, %c1_10, %c0_11, %c0_12], %25 {strides = array<i32>} : memref<1x4x2x128xf32, #tpu.memory_space<vmem>>, vector<1x1x2x128xf32>,
    %26 = vector.extract_strided_slice %0 {offsets = [0, 2, 0, 0], sizes = [1, 1, 2, 128], strides = [1, 1, 1, 1]} : vector<1x4x2x128xf32> to vector<1x1x2x128xf32>
    %27 = vector.shape_cast %26 : vector<1x1x2x128xf32> to vector<2x128xf32>
    %28 = arith.mulf %27, %7 : vector<2x128xf32>
    %c2 = arith.constant 2 : index
    %29 = memref.load %arg3[%c2] : memref<4xf32, #tpu.memory_space<smem>>
    %30 = vector.broadcast %29 : f32 to vector<2x128xf32>
    %31 = arith.mulf %28, %30 : vector<2x128xf32>
    %c0_13 = arith.constant 0 : index
    %c2_14 = arith.constant 2 : index
    %c0_15 = arith.constant 0 : index
    %c0_16 = arith.constant 0 : index
    %32 = vector.load %arg4[%c0_13, %c2_14, %c0_15, %c0_16] : memref<1x4x2x128xf32, #tpu.memory_space<vmem>>, vector<1x1x2x128xf32>
    %33 = vector.shape_cast %32 : vector<1x1x2x128xf32> to vector<2x128xf32>
    %34 = vector.shape_cast %31 : vector<2x128xf32> to vector<1x1x2x128xf32>
    tpu.vector_store %arg4[%c0_13, %c2_14, %c0_15, %c0_16], %34 {strides = array<i32>} : memref<1x4x2x128xf32, #tpu.memory_space<vmem>>, vector<1x1x2x128xf32>,
    %35 = vector.extract_strided_slice %0 {offsets = [0, 3, 0, 0], sizes = [1, 1, 2, 128], strides = [1, 1, 1, 1]} : vector<1x4x2x128xf32> to vector<1x1x2x128xf32>
    %36 = vector.shape_cast %35 : vector<1x1x2x128xf32> to vector<2x128xf32>
    %37 = arith.mulf %36, %7 : vector<2x128xf32>
    %c3 = arith.constant 3 : index
    %38 = memref.load %arg3[%c3] : memref<4xf32, #tpu.memory_space<smem>>
    %39 = vector.broadcast %38 : f32 to vector<2x128xf32>
    %40 = arith.mulf %37, %39 : vector<2x128xf32>
    %c0_17 = arith.constant 0 : index
    %c3_18 = arith.constant 3 : index
    %c0_19 = arith.constant 0 : index
    %c0_20 = arith.constant 0 : index
    %41 = vector.load %arg4[%c0_17, %c3_18, %c0_19, %c0_20] : memref<1x4x2x128xf32, #tpu.memory_space<vmem>>, vector<1x1x2x128xf32>
    %42 = vector.shape_cast %41 : vector<1x1x2x128xf32> to vector<2x128xf32>
    %43 = vector.shape_cast %40 : vector<2x128xf32> to vector<1x1x2x128xf32>
    tpu.vector_store %arg4[%c0_17, %c3_18, %c0_19, %c0_20], %43 {strides = array<i32>} : memref<1x4x2x128xf32, #tpu.memory_space<vmem>>, vector<1x1x2x128xf32>,
    return
  }
  func.func @transform_0(%arg0: i32, %arg1: i32) -> (i32, i32, i32, i32) {
    %c0_i32 = arith.constant 0 : i32
    %c0_i32_0 = arith.constant 0 : i32
    %c0_i32_1 = arith.constant 0 : i32
    return %arg0, %c0_i32, %arg1, %c0_i32_0 : i32, i32, i32, i32
  }
  func.func @transform_1(%arg0: i32, %arg1: i32) -> i32 {
    %c0_i32 = arith.constant 0 : i32
    %c0_i32_0 = arith.constant 0 : i32
    return %c0_i32 : i32
  }
  func.func @transform_2(%arg0: i32, %arg1: i32) -> (i32, i32, i32, i32) {
    %c0_i32 = arith.constant 0 : i32
    %c0_i32_0 = arith.constant 0 : i32
    %c0_i32_1 = arith.constant 0 : i32
    return %arg0, %c0_i32, %arg1, %c0_i32_0 : i32, i32, i32, i32
  }
}

</mosaic_0001>

<llo_original>
// kernel: tpu_custom_call.1
$region0: #{tpu_custom_call.1}
  #allocation0 [shape = 'u32[]', space=smem, size = 0x4, offset = 0x4, fixed_abs, tag = 'smem constant byte address 0x4 - core index']
  #allocation1 [shape = 'u32[144,128]{1,0:T(1,128)}', space=vmem, size = 0x12000, scoped, tag = 'internal scratch']
  %s0 = inlined_call_operand.hbm [shape: f32[2,4,2,128], index: 0, kind: input, shape index: {}]
  %s1 = inlined_call_operand.vmem [shape: f32[4], index: 1, kind: input, shape index: {}]
  %s2 = inlined_call_operand.hbm [shape: f32[2,4,2,128], index: 2, kind: output, shape index: {}]
  %s3 = sld [smem:[#allocation0]]
  $region49: #{tpu_custom_call.1} parent=0
    _
  %s5 = ssub.s32 1, %s3
  %s6 = scalar_select 0, %s5, %s3
  $region1: #{tpu_custom_call.1} parent=0
    #allocation2 [shape = 'u8[8192]{0}', space=vmem, size = 0x2000, scoped, tag = 'input window, operand 0']
    #allocation3 [shape = 's32[2]{0}', space=sflag, size = 0x8, scoped, tag = 'scoped memory for tpu_custom_call.1']
    #allocation4 [shape = 's32[2]{0}', space=sflag, size = 0x8, scoped, tag = 'scoped memory for tpu_custom_call.1']
    #allocation5 [shape = 's32[2]{0}', space=sflag, size = 0x8, scoped, tag = 'scoped memory for tpu_custom_call.1']
    #allocation6 [shape = 'u8[512]{0}', space=smem, size = 0x200, scoped, tag = 'input window, operand 1, single buffered']
    #allocation7 [shape = 'u8[8192]{0}', space=vmem, size = 0x2000, scoped, tag = 'output window, operand 0']
    %7 = vsyncpa [#allocation3], 0
    %s8 = scalar_lea.sflag [#allocation3], 1
    %9 = vsyncpa %s8, 0
    %10 = vsyncpa [#allocation5], 0
    %11 = vsyncpa [#allocation4], 0
    %s12 = scalar_lea.sflag [#allocation4], 1
    %13 = vsyncpa %s12, 0
    loop: start=0, step=1, limit=4
    $region2: #{tpu_custom_call.1} parent=1 // loop_pre_header
      _
    $region3: #{tpu_custom_call.1} parent=1 // loop_header
      %s15 = sphi 0, %s19
      %p16 = scmp.ge.s32.totalorder %s15, 4
      %s22 = sphi 0, %s34
      %s23 = sphi 0, %s30
      %s24 = sphi 0, %s22
      %s25 = sphi 0, %s23
      %s26 = sphi 0, %s24
      %s27 = sphi 0, %s25
      %s39 = sphi 0, %s41
      %s42 = sphi 0, %s39
      %s43 = sphi 0, %s42
      %s59 = sphi 0, %s43
      %s63 = sphi 0, %s63
      %s65 = sphi 0, %s63
      %s66 = sphi 0, %s65
      %s80 = sphi 0, %s66
      %s88 = sphi 0, %s90
      %s91 = sphi 0, %s88
      %s92 = sphi 0, %s91
      %s108 = sphi 0, %s92
    $region4: #{tpu_custom_call.1} parent=1 // loop_header_branch
      %18 = sbr.rel (%p16) target = $region8
    $region5: #{tpu_custom_call.1} parent=1 // loop_body
      %s20 = ssub.s32 %s15, 1
      %s21 = ssub.s32 %s15, 2
      %s28 = sadd.s32 1, %s23
      %p29 = scmp.ge.s32.totalorder %s28, 1
      %s30 = scalar_select %p29, 0, %s28
      %s31 = sadd.s32 1, %s22
      %s32 = scalar_select %p29, %s31, %s22
      %p33 = scmp.ge.s32.totalorder %s32, 2
      %s34 = scalar_select %p33, 0, %s32
      %s35 = ssub.s32 %s22, %s34
      %s36 = ssub.s32 %s23, %s30
      %s37 = sor.u32 %s35, %s36
      %p38 = scmp.eq.s32.totalorder %s37, 0
      %s40 = sadd.s32 %s39, 1
      %s41 = scalar_select %p38, %s39, %s40
      %p44 = pneg %p38
      %p45 = scmp.eq.s32.totalorder %s15, 1
      %p46 = por %p44, %p45
      %p47 = scmp.ne.s32.totalorder %s39, %s42
      %p48 = scmp.eq.s32.totalorder %s15, 0
      %p49 = por %p47, %p48
      %p50 = scmp.ne.s32.totalorder %s39, %s42
      %p51 = scmp.eq.s32.totalorder %s20, 1
      %p52 = por %p50, %p51
      %p53 = scmp.ne.s32.totalorder %s42, %s43
      %p54 = scmp.eq.s32.totalorder %s20, 0
      %p55 = por %p53, %p54
      %p56 = scmp.ne.s32.totalorder %s42, %s43
      %p57 = scmp.eq.s32.totalorder %s21, 1
      %p58 = por %p56, %p57
      %p60 = scmp.ne.s32.totalorder %s43, %s59
      %p61 = scmp.eq.s32.totalorder %s21, 0
      %p62 = por %p60, %p61
      %s64 = sadd.s32 %s63, 1
      %p67 = scmp.eq.s32.totalorder %s15, 1
      %p68 = scmp.ne.s32.totalorder %s63, %s65
      %p69 = scmp.eq.s32.totalorder %s15, 0
      %p70 = por %p68, %p69
      %p71 = scmp.ne.s32.totalorder %s63, %s65
      %p72 = scmp.eq.s32.totalorder %s20, 1
      %p73 = por %p71, %p72
      %p74 = scmp.ne.s32.totalorder %s65, %s66
      %p75 = scmp.eq.s32.totalorder %s20, 0
      %p76 = por %p74, %p75
      %p77 = scmp.ne.s32.totalorder %s65, %s66
      %p78 = scmp.eq.s32.totalorder %s21, 1
      %p79 = por %p77, %p78
      %p81 = scmp.ne.s32.totalorder %s66, %s80
      %p82 = scmp.eq.s32.totalorder %s21, 0
      %p83 = por %p81, %p82
      %s84 = ssub.s32 %s22, %s34
      %s85 = ssub.s32 %s23, %s30
      %s86 = sor.u32 %s84, %s85
      %p87 = scmp.eq.s32.totalorder %s86, 0
      %s89 = sadd.s32 %s88, 1
      %s90 = scalar_select %p87, %s88, %s89
      %p93 = pneg %p87
      %p94 = scmp.eq.s32.totalorder %s15, 1
      %p95 = por %p93, %p94
      %p96 = scmp.ne.s32.totalorder %s88, %s91
      %p97 = scmp.eq.s32.totalorder %s15, 0
      %p98 = por %p96, %p97
      %p99 = scmp.ne.s32.totalorder %s88, %s91
      %p100 = scmp.eq.s32.totalorder %s20, 1
      %p101 = por %p99, %p100
      %p102 = scmp.ne.s32.totalorder %s91, %s92
      %p103 = scmp.eq.s32.totalorder %s20, 0
      %p104 = por %p102, %p103
      %p105 = scmp.ne.s32.totalorder %s91, %s92
      %p106 = scmp.eq.s32.totalorder %s21, 1
      %p107 = por %p105, %p106
      %p109 = scmp.ne.s32.totalorder %s92, %s108
      %p110 = scmp.eq.s32.totalorder %s21, 0
      %p111 = por %p109, %p110
      %p112 = scmp.le.s32.totalorder 1, %s15
      %p113 = scmp.lt.s32.totalorder %s15, 3
      %p114 = pnand %p112, %p113
      %p115 = pneg %p114
      // Predicated region
      $region9: #{tpu_custom_call.1} parent=5 // pred_check
        _
      $region10: #{tpu_custom_call.1} parent=5 // pred_check_branch
        %117 = sbr.rel (%p114) target = $region12
      $region11: #{tpu_custom_call.1} parent=5 // pred_region
        %s118 = ssub.s32 %s15, 1
        // Predicated region
        $region13: #{tpu_custom_call.1} parent=11 // pred_check
          %p119 = pneg %p76
        $region14: #{tpu_custom_call.1} parent=11 // pred_check_branch
          %121 = sbr.rel (%p119) target = $region16
        $region15: #{tpu_custom_call.1} parent=11 // pred_region
          %s123 = ssub.s32 16, 16
          %124 = vsyncadd [#allocation5], %s123
          %s126 = sshll.u32 %s1, 4
          %s127 = int_to_ptr.vmem [resolvable:$true] %s126
          %129 = dma.vmem_to_smem %s127, 16, [#allocation6], [#allocation5]
        $region16: #{tpu_custom_call.1} parent=11 // pred_fallthru
          _
      $region12: #{tpu_custom_call.1} parent=5 // pred_fallthru
        _
      %p130 = scmp.lt.s32.totalorder %s15, 2
      // Predicated region
      $region17: #{tpu_custom_call.1} parent=5 // pred_check
        %p131 = pneg %p130
      $region18: #{tpu_custom_call.1} parent=5 // pred_check_branch
        %133 = sbr.rel (%p131) target = $region20
      $region19: #{tpu_custom_call.1} parent=5 // pred_region
        // Predicated region
        $region21: #{tpu_custom_call.1} parent=19 // pred_check
          %p134 = pneg %p49
        $region22: #{tpu_custom_call.1} parent=19 // pred_check_branch
          %136 = sbr.rel (%p134) target = $region24
        $region23: #{tpu_custom_call.1} parent=19 // pred_region
          %s137 = sand.u32 %s39, 1
          %s138 = scalar_lea.sflag [#allocation3], %s137
          %s139 = sand.u32 %s39, 1
          %s140 = smul.addr %s139, 8
          %s141 = scalar_lea.vmem [#allocation2], %s140
          %s143 = ssub.s32 128, 128
          %144 = vsyncadd %s138, %s143
          %s145 = smul.addr %s22, 4
          %s146 = sadd.s32 %s23, %s145
          %s147 = smul.addr %s146, 32
          %s148 = scalar_lea.hbm %s0, %s147
          %s149 = sshll.u32 %s141, 4
          %s150 = int_to_ptr.vmem [resolvable:$true] %s149
          %155 = dma.hbm_to_vmem [thread:$0]  %s148, 128, %s150, %s138, 32, 32, 2
        $region24: #{tpu_custom_call.1} parent=19 // pred_fallthru
          _
      $region20: #{tpu_custom_call.1} parent=5 // pred_fallthru
        _
      %p156 = scmp.le.s32.totalorder 1, %s15
      %p157 = scmp.lt.s32.totalorder %s15, 3
      %p158 = pnand %p156, %p157
      %p159 = pneg %p158
      // Predicated region
      $region25: #{tpu_custom_call.1} parent=5 // pred_check
        _
      $region26: #{tpu_custom_call.1} parent=5 // pred_check_branch
        %161 = sbr.rel (%p158) target = $region28
      $region27: #{tpu_custom_call.1} parent=5 // pred_region
        %s162 = ssub.s32 %s15, 1
        %s163 = sand.u32 %s42, 1
        %s164 = scalar_lea.sflag [#allocation3], %s163
        %s165 = sand.u32 %s42, 1
        %s166 = smul.addr %s165, 8
        %s167 = scalar_lea.vmem [#allocation2], %s166
        // Predicated region
        $region29: #{tpu_custom_call.1} parent=27 // pred_check
          %p168 = pneg %p55
        $region30: #{tpu_custom_call.1} parent=27 // pred_check_branch
          %170 = sbr.rel (%p168) target = $region32
        $region31: #{tpu_custom_call.1} parent=27 // pred_region
          %171 = dma.done %s164, 128
        $region32: #{tpu_custom_call.1} parent=27 // pred_fallthru
          _
        // Predicated region
        $region33: #{tpu_custom_call.1} parent=27 // pred_check
          %p172 = pneg %p76
        $region34: #{tpu_custom_call.1} parent=27 // pred_check_branch
          %174 = sbr.rel (%p172) target = $region36
        $region35: #{tpu_custom_call.1} parent=27 // pred_region
          %175 = dma.done [#allocation5], 16
        $region36: #{tpu_custom_call.1} parent=27 // pred_fallthru
          _
        %176 = sfence
        %s177 = sand.u32 %s42, 1
        %s178 = scalar_lea.sflag [#allocation3], %s177
        %s179 = sand.u32 %s42, 1
        %s180 = smul.addr %s179, 8
        %s181 = scalar_lea.vmem [#allocation2], %s180
        %p182 = pneg %p55
        %p183 = pneg %p52
        %p184 = pneg %p76
        %p185 = pneg %p73
        %p186 = pneg %p104
        %p187 = pneg %p101
        %s188 = sand.u32 %s91, 1
        %s189 = scalar_lea.sflag [#allocation4], %s188
        %s190 = sand.u32 %s91, 1
        %s191 = smul.addr %s190, 8
        %s192 = scalar_lea.vmem [#allocation7], %s191
        %v193 = vld [vmem:[%s167] sm:$0x3]
        %v194 = vld [vmem:[%s167 + $0x2] sm:$0x3]
        %v195 = vld [vmem:[%s167 + $0x4] sm:$0x3]
        %v196 = vld [vmem:[%s167 + $0x6] sm:$0x3]
        %v197 = vmul.f32 %v193, %v193
        %v198 = vmul.f32 %v194, %v194
        %v199 = vmul.f32 %v195, %v195
        %v200 = vmul.f32 %v196, %v196
        %vm201 = vcmask 1041408
        %v202 = vsel %vm201, %v197, 0.0
        %v203 = vsel %vm201, %v198, 0.0
        %v204 = vadd.f32 %v202, %v203
        %v205 = vsel %vm201, %v199, 0.0
        %v206 = vadd.f32 %v204, %v205
        %v207 = vsel %vm201, %v200, 0.0
        %v208 = vadd.f32 %v206, %v207
        %v209 = vrsqrt.pop %v208
        %v210 = vmul.f32 %v208, %v209
        %vm211 = vcmp.eq.f32.partialorder %v208, inf
        %v212 = vsel %vm211, %v208, %v210
        %vm213 = vcmp.eq.f32.partialorder %v208, 0.0
        %v214 = vand.u32 %v208, 2147483648
        %v215 = vsel %vm213, %v214, %v212
        %v216 = vadd.f32 %v215, 1e-10
        %v217 = vrcp.pop %v216
        %v218 = vmul.f32 %v193, %v217
        %s219 = sld [smem:[#allocation6]]
        %v220 = vstv %s219
        %v221 = vmul.f32 %v218, %v220
        %222 = vst [vmem:[%s192] sm:$0x3] %v221
        %v223 = vmul.f32 %v194, %v217
        %s224 = sld [smem:[#allocation6 + $0x1]]
        %v225 = vstv %s224
        %v226 = vmul.f32 %v223, %v225
        %s227 = scalar_lea.vmem %s192, 2 [#allocation7]
        %228 = vst [vmem:[%s227] sm:$0x3] %v226
        %v229 = vmul.f32 %v195, %v217
        %s230 = sld [smem:[#allocation6 + $0x2]]
        %v231 = vstv %s230
        %v232 = vmul.f32 %v229, %v231
        %s233 = scalar_lea.vmem %s192, 4 [#allocation7]
        %234 = vst [vmem:[%s233] sm:$0x3] %v232
        %v235 = vmul.f32 %v196, %v217
        %s236 = sld [smem:[#allocation6 + $0x3]]
        %v237 = vstv %s236
        %v238 = vmul.f32 %v235, %v237
        %s239 = scalar_lea.vmem %s192, 6 [#allocation7]
        %240 = vst [vmem:[%s239] sm:$0x3] %v238
        %s241 = sand.u32 %s91, 1
        %s242 = scalar_lea.sflag [#allocation4], %s241
        %s243 = sand.u32 %s91, 1
        %s244 = smul.addr %s243, 8
        %s245 = scalar_lea.vmem [#allocation7], %s244
        // Predicated region
        $region37: #{tpu_custom_call.1} parent=27 // pred_check
          %p246 = pneg %p101
        $region38: #{tpu_custom_call.1} parent=27 // pred_check_branch
          %248 = sbr.rel (%p246) target = $region40
        $region39: #{tpu_custom_call.1} parent=27 // pred_region
          %s250 = ssub.s32 128, 128
          %251 = vsyncadd %s242, %s250
          %s252 = smul.addr %s24, 4
          %s253 = sadd.s32 %s25, %s252
          %s254 = smul.addr %s253, 32
          %s255 = scalar_lea.hbm %s2, %s254
          %s256 = sshll.u32 %s245, 4
          %s257 = int_to_ptr.vmem [resolvable:$true] %s256
          %262 = dma.vmem_to_hbm [thread:$0]  %s257, 128, %s255, %s242, 32, 32, 2
        $region40: #{tpu_custom_call.1} parent=27 // pred_fallthru
          _
      $region28: #{tpu_custom_call.1} parent=5 // pred_fallthru
        _
      %p263 = scmp.le.s32.totalorder 2, %s15
      // Predicated region
      $region41: #{tpu_custom_call.1} parent=5 // pred_check
        %p264 = pneg %p263
      $region42: #{tpu_custom_call.1} parent=5 // pred_check_branch
        %266 = sbr.rel (%p264) target = $region44
      $region43: #{tpu_custom_call.1} parent=5 // pred_region
        %s267 = ssub.s32 %s15, 2
        // Predicated region
        $region45: #{tpu_custom_call.1} parent=43 // pred_check
          %p268 = pneg %p107
        $region46: #{tpu_custom_call.1} parent=43 // pred_check_branch
          %270 = sbr.rel (%p268) target = $region48
        $region47: #{tpu_custom_call.1} parent=43 // pred_region
          %s271 = sand.u32 %s92, 1
          %s272 = scalar_lea.sflag [#allocation4], %s271
          %s273 = sand.u32 %s92, 1
          %s274 = smul.addr %s273, 8
          %s275 = scalar_lea.vmem [#allocation7], %s274
          %276 = dma.done %s272, 128
        $region48: #{tpu_custom_call.1} parent=43 // pred_fallthru
          _
      $region44: #{tpu_custom_call.1} parent=5 // pred_fallthru
        _
    $region6: #{tpu_custom_call.1} parent=1 // loop_footer
      %s19 = sadd.s32 1, %s15
    $region7: #{tpu_custom_call.1} parent=1 // loop_footer_branch
      %14 = sbr.rel target = $region3
    $region8: #{tpu_custom_call.1} parent=1 // loop_exit
      _
    %277 = vsyncpa [#allocation3], 1
    %s278 = scalar_lea.sflag [#allocation3], 1
    %279 = vsyncpa %s278, 1
    %280 = vsyncpa [#allocation4], 1
    %s281 = scalar_lea.sflag [#allocation4], 1
    %282 = vsyncpa %s281, 1
    %283 = vsyncpa [#allocation5], 1
    %s284 = scalar_lea.sflag [#allocation5], 1
    %285 = vsyncpa %s284, 1

</llo_original>
